<compile_context>
chip_gen: v6e
topology: v6e:2x2x1
jax: 0.10.0
libtpu: 0.0.40
codegen_flags: <defaults>
</compile_context>

<pallas_src>
import jax
import jax.numpy as jnp
from jax.experimental import pallas as pl
from jax.experimental.pallas import tpu as pltpu

LANE = 128
HIDDEN1, HIDDEN1_P = 1000, 1024
HIDDEN2, HIDDEN2_P = 50, 128
MAX_TILE_B = 1024  # f32 sublane multiple; h1 bf16 at tile_b=1024 is ~2 MiB
NEG_INF = -1e30


def _round_up(x, m):
    return ((x + m - 1) // m) * m


def _net_kernel(x_ref, w1_ref, b1_ref, w2_ref, b2_ref, w3_ref, b3_ref, o_ref):
    # bf16 MXU operands, f32 accumulation; bias add / ReLU in f32 on the VPU,
    # with the bf16 downcast fused into the ReLU epilogue so the big f32
    # intermediates never round-trip through VMEM.
    x = x_ref[...].astype(jnp.bfloat16)                                 # (TB, 128)

    h1 = jnp.dot(x, w1_ref[...], preferred_element_type=jnp.float32)   # (TB, 1024)
    h1 = jnp.maximum(h1 + b1_ref[...], 0.0).astype(jnp.bfloat16)

    h2 = jnp.dot(h1, w2_ref[...], preferred_element_type=jnp.float32)  # (TB, 128)
    h2 = jnp.maximum(h2 + b2_ref[...], 0.0).astype(jnp.bfloat16)

    logits = jnp.dot(h2, w3_ref[...], preferred_element_type=jnp.float32)
    # b3 carries -1e30 on padded action lanes (and padded W3 columns are 0), so the
    # padded lanes are masked out of the softmax with no per-tile iota/where.
    logits = logits + b3_ref[...]

    # softmax over last dim (PyTorch nn.Softmax() -> dim=1 for 2-D input)
    m = jnp.max(logits, axis=-1, keepdims=True)
    e = jnp.exp(logits - m)
    denom = jnp.sum(e, axis=-1, keepdims=True)
    o_ref[...] = e * pl.reciprocal(denom, approx=True)


def net_forward(x, params, actions_num):
    """x: (batch, states_dim) f32. params: padded bf16 weights / f32 biases."""
    w1, b1, w2, b2, w3, b3 = (params["w1"], params["b1"], params["w2"],
                              params["b2"], params["w3"], params["b3"])
    batch, states_dim = x.shape
    states_pad = w1.shape[0]
    actions_pad = w3.shape[1]

    # Near-equal batch tiles: pad a handful of rows at most instead of rounding the
    # whole batch up to a multiple of MAX_TILE_B.
    num_tiles = -(-batch // MAX_TILE_B)
    tile_b = _round_up(-(-batch // num_tiles), 8)
    batch_pad = num_tiles * tile_b

    # Lane-dense x: pad feature dim to 128 (W1 rows >= states_dim are zero) and pad
    # batch rows (sliced off afterwards).
    x = jnp.pad(x, ((0, batch_pad - batch), (0, states_pad - states_dim)))
    grid = (num_tiles,)

    def resident(arr):
        # Full-array block, constant index_map -> DMA'd once, resident across steps.
        return pl.BlockSpec(arr.shape, lambda i: (0, 0))

    out = pl.pallas_call(
        _net_kernel,
        out_shape=jax.ShapeDtypeStruct((batch_pad, actions_pad), jnp.float32),
        grid=grid,
        in_specs=[
            pl.BlockSpec((tile_b, states_pad), lambda i: (i, 0)),  # x: batch-tiled
            resident(w1), resident(b1),
            resident(w2), resident(b2),
            resident(w3), resident(b3),
        ],
        out_specs=pl.BlockSpec((tile_b, actions_pad), lambda i: (i, 0)),
        compiler_params=pltpu.CompilerParams(
            dimension_semantics=("parallel",),
            vmem_limit_bytes=32 * 1024 * 1024),
    )(x, w1, b1, w2, b2, w3, b3)

    return out[:batch, :actions_num]


def init_params(key, states_dim, actions_num):
    """Mirrors Net.__init__ shapes (fc1: S->1000, fc2: 1000->50, out: 50->A) with
       N(0, 0.1) weights and PyTorch-default uniform biases, zero-padded to
       lane-friendly widths (128 / 1024 / 128 / 128). Weights bf16, biases f32.
       b3's padded action lanes are set to -1e30 so softmax masking is free."""
    states_pad = _round_up(max(states_dim, 1), LANE)
    actions_pad = _round_up(max(actions_num, 1), LANE)
    ks = jax.random.split(key, 6)

    def w(k, fan_in, fan_out, in_pad, out_pad):
        vals = 0.1 * jax.random.normal(k, (fan_in, fan_out), dtype=jnp.float32)
        full = jnp.zeros((in_pad, out_pad), jnp.float32)
        full = full.at[:fan_in, :fan_out].set(vals)
        return full.astype(jnp.bfloat16)  # stored (in, out) = torch weight transposed

    def b(k, fan_in, fan_out, out_pad, pad_value=0.0):
        bound = 1.0 / (fan_in ** 0.5)
        vals = jax.random.uniform(k, (1, fan_out), minval=-bound, maxval=bound,
                                  dtype=jnp.float32)
        full = jnp.full((1, out_pad), pad_value, jnp.float32)
        return full.at[:, :fan_out].set(vals)

    return {
        "w1": w(ks[0], states_dim, HIDDEN1, states_pad, HIDDEN1_P),
        "b1": b(ks[1], states_dim, HIDDEN1, HIDDEN1_P),
        "w2": w(ks[2], HIDDEN1, HIDDEN2, HIDDEN1_P, HIDDEN2_P),
        "b2": b(ks[3], HIDDEN1, HIDDEN2, HIDDEN2_P),
        "w3": w(ks[4], HIDDEN2, actions_num, HIDDEN2_P, actions_pad),
        "b3": b(ks[5], HIDDEN2, actions_num, actions_pad, pad_value=NEG_INF),
    }


def ref_forward(x, params, actions_num):
    """Pure-JAX reference mirroring the kernel's bf16-operand / f32-accumulate math."""
    states_pad = params["w1"].shape[0]
    xp = jnp.pad(x, ((0, 0), (0, states_pad - x.shape[1])))

    def mm(a, w):
        return jnp.dot(a.astype(jnp.bfloat16), w,
                       preferred_element_type=jnp.float32)

    h1 = jnp.maximum(mm(xp, params["w1"]) + params["b1"], 0.0).astype(jnp.bfloat16)
    h2 = jnp.maximum(mm(h1, params["w2"]) + params["b2"], 0.0).astype(jnp.bfloat16)
    logits = (mm(h2, params["w3"]) + params["b3"])[:, :actions_num]
    return jax.nn.softmax(logits, axis=-1)


if __name__ == "__main__":
    states_dim = 32
    actions_num = 8

    key = jax.random.PRNGKey(0)
    k_params, k_x = jax.random.split(key)
    params = init_params(k_params, states_dim, actions_num)

    for batch in (8, 300):  # small case + case exercising padding / near-equal tiling
        kx = jax.random.fold_in(k_x, batch)
        x = jax.random.normal(kx, (batch, states_dim), dtype=jnp.float32)

        out = jax.block_until_ready(net_forward(x, params, actions_num))

        assert out.shape == (batch, actions_num)
        # approx reciprocal -> row sums ~1 within ~1e-3
        row_sums = jnp.sum(out, axis=-1)
        assert bool(jnp.all(jnp.abs(row_sums - 1.0) < 1e-2))
        # compare against a matching pure-JAX reference
        ref = ref_forward(x, params, actions_num)
        assert bool(jnp.max(jnp.abs(out - ref)) < 2e-2)

    print("KERNEL_OK")
</pallas_src>

<mosaic_0001>
module attributes {stable_mosaic.version = 11 : i64} {
  func.func @_net_kernel(%arg0: i32, %arg1: memref<8x128xf32, #tpu.memory_space<vmem>>, %arg2: memref<128x1024xbf16, #tpu.memory_space<vmem>>, %arg3: memref<1x1024xf32, #tpu.memory_space<vmem>>, %arg4: memref<1024x128xbf16, #tpu.memory_space<vmem>>, %arg5: memref<1x128xf32, #tpu.memory_space<vmem>>, %arg6: memref<128x128xbf16, #tpu.memory_space<vmem>>, %arg7: memref<1x128xf32, #tpu.memory_space<vmem>>, %arg8: memref<8x128xf32, #tpu.memory_space<vmem>>) attributes {dimension_semantics = [#tpu.dimension_semantics<parallel>], iteration_bounds = array<i64: 1>, scalar_prefetch = 0 : i64, scratch_operands = 0 : i64, tpu.core_type = #tpu.core_type<tc>, window_params = [{transform_indices = @transform_0, window_bounds = array<i64: 8, 128>}, {pipeline_mode = #tpu.pipeline_mode<synchronous>, transform_indices = @transform_1, window_bounds = array<i64: 128, 1024>}, {pipeline_mode = #tpu.pipeline_mode<synchronous>, transform_indices = @transform_2, window_bounds = array<i64: 1, 1024>}, {pipeline_mode = #tpu.pipeline_mode<synchronous>, transform_indices = @transform_3, window_bounds = array<i64: 1024, 128>}, {pipeline_mode = #tpu.pipeline_mode<synchronous>, transform_indices = @transform_4, window_bounds = array<i64: 1, 128>}, {pipeline_mode = #tpu.pipeline_mode<synchronous>, transform_indices = @transform_5, window_bounds = array<i64: 128, 128>}, {pipeline_mode = #tpu.pipeline_mode<synchronous>, transform_indices = @transform_6, window_bounds = array<i64: 1, 128>}, {transform_indices = @transform_7, window_bounds = array<i64: 8, 128>}]} {
    %c0 = arith.constant 0 : index
    %c0_0 = arith.constant 0 : index
    %0 = vector.load %arg1[%c0, %c0_0] : memref<8x128xf32, #tpu.memory_space<vmem>>, vector<8x128xf32>
    %1 = arith.truncf %0 : vector<8x128xf32> to vector<8x128xbf16>
    %c0_1 = arith.constant 0 : index
    %c0_2 = arith.constant 0 : index
    %2 = vector.load %arg2[%c0_1, %c0_2] : memref<128x1024xbf16, #tpu.memory_space<vmem>>, vector<128x1024xbf16>
    %cst = arith.constant dense<0.000000e+00> : vector<8x1024xf32>
    %3 = tpu.matmul %1, %2, %cst {dimension_numbers = #tpu.dot_dimension_numbers<[1], [0], [0], [1], [0, 0, 1, 1], [], []>} : vector<8x128xbf16>, vector<128x1024xbf16>, vector<8x1024xf32> -> vector<8x1024xf32>
    %c0_3 = arith.constant 0 : index
    %c0_4 = arith.constant 0 : index
    %4 = vector.load %arg3[%c0_3, %c0_4] : memref<1x1024xf32, #tpu.memory_space<vmem>>, vector<1x1024xf32>
    %5 = vector.broadcast %4 : vector<1x1024xf32> to vector<8x1024xf32>
    %6 = arith.addf %3, %5 : vector<8x1024xf32>
    %cst_5 = arith.constant 0.000000e+00 : f32
    %7 = vector.broadcast %cst_5 : f32 to vector<8x1024xf32>
    %8 = arith.maximumf %6, %7 : vector<8x1024xf32>
    %9 = arith.truncf %8 : vector<8x1024xf32> to vector<8x1024xbf16>
    %c0_6 = arith.constant 0 : index
    %c0_7 = arith.constant 0 : index
    %10 = vector.load %arg4[%c0_6, %c0_7] : memref<1024x128xbf16, #tpu.memory_space<vmem>>, vector<1024x128xbf16>
    %cst_8 = arith.constant dense<0.000000e+00> : vector<8x128xf32>
    %11 = tpu.matmul %9, %10, %cst_8 {dimension_numbers = #tpu.dot_dimension_numbers<[1], [0], [0], [1], [0, 0, 1, 1], [], []>} : vector<8x1024xbf16>, vector<1024x128xbf16>, vector<8x128xf32> -> vector<8x128xf32>
    %c0_9 = arith.constant 0 : index
    %c0_10 = arith.constant 0 : index
    %12 = vector.load %arg5[%c0_9, %c0_10] : memref<1x128xf32, #tpu.memory_space<vmem>>, vector<1x128xf32>
    %13 = vector.broadcast %12 : vector<1x128xf32> to vector<8x128xf32>
    %14 = arith.addf %11, %13 : vector<8x128xf32>
    %cst_11 = arith.constant 0.000000e+00 : f32
    %15 = vector.broadcast %cst_11 : f32 to vector<8x128xf32>
    %16 = arith.maximumf %14, %15 : vector<8x128xf32>
    %17 = arith.truncf %16 : vector<8x128xf32> to vector<8x128xbf16>
    %c0_12 = arith.constant 0 : index
    %c0_13 = arith.constant 0 : index
    %18 = vector.load %arg6[%c0_12, %c0_13] : memref<128x128xbf16, #tpu.memory_space<vmem>>, vector<128x128xbf16>
    %cst_14 = arith.constant dense<0.000000e+00> : vector<8x128xf32>
    %19 = tpu.matmul %17, %18, %cst_14 {dimension_numbers = #tpu.dot_dimension_numbers<[1], [0], [0], [1], [0, 0, 1, 1], [], []>} : vector<8x128xbf16>, vector<128x128xbf16>, vector<8x128xf32> -> vector<8x128xf32>
    %c0_15 = arith.constant 0 : index
    %c0_16 = arith.constant 0 : index
    %20 = vector.load %arg7[%c0_15, %c0_16] : memref<1x128xf32, #tpu.memory_space<vmem>>, vector<1x128xf32>
    %21 = vector.broadcast %20 : vector<1x128xf32> to vector<8x128xf32>
    %22 = arith.addf %19, %21 : vector<8x128xf32>
    %cst_17 = arith.constant dense<0xFF800000> : vector<8xf32>
    %23 = vector.multi_reduction <maximumf>, %22, %cst_17 [1] : vector<8x128xf32> to vector<8xf32>
    %24 = vector.shape_cast %23 : vector<8xf32> to vector<8x1xf32>
    %25 = vector.broadcast %24 : vector<8x1xf32> to vector<8x128xf32>
    %26 = arith.subf %22, %25 : vector<8x128xf32>
    %27 = math.exp %26 : vector<8x128xf32>
    %cst_18 = arith.constant dense<0.000000e+00> : vector<8xf32>
    %28 = vector.multi_reduction <add>, %27, %cst_18 [1] : vector<8x128xf32> to vector<8xf32>
    %29 = vector.shape_cast %28 : vector<8xf32> to vector<8x1xf32>
    %30 = tpu.reciprocal %29 {approx = true} : vector<8x1xf32> -> vector<8x1xf32>
    %31 = vector.broadcast %30 : vector<8x1xf32> to vector<8x128xf32>
    %32 = arith.mulf %27, %31 : vector<8x128xf32>
    %c0_19 = arith.constant 0 : index
    %c0_20 = arith.constant 0 : index
    %33 = vector.load %arg8[%c0_19, %c0_20] : memref<8x128xf32, #tpu.memory_space<vmem>>, vector<8x128xf32>
    tpu.vector_store %arg8[%c0_19, %c0_20], %32 {strides = array<i32>} : memref<8x128xf32, #tpu.memory_space<vmem>>, vector<8x128xf32>,
    return
  }
  func.func @transform_0(%arg0: i32) -> (i32, i32) {
    %c0_i32 = arith.constant 0 : i32
    %c0_i32_0 = arith.constant 0 : i32
    return %arg0, %c0_i32 : i32, i32
  }
  func.func @transform_1(%arg0: i32) -> (i32, i32) {
    %c0_i32 = arith.constant 0 : i32
    %c0_i32_0 = arith.constant 0 : i32
    %c0_i32_1 = arith.constant 0 : i32
    return %c0_i32, %c0_i32_0 : i32, i32
  }
  func.func @transform_2(%arg0: i32) -> (i32, i32) {
    %c0_i32 = arith.constant 0 : i32
    %c0_i32_0 = arith.constant 0 : i32
    %c0_i32_1 = arith.constant 0 : i32
    return %c0_i32, %c0_i32_0 : i32, i32
  }
  func.func @transform_3(%arg0: i32) -> (i32, i32) {
    %c0_i32 = arith.constant 0 : i32
    %c0_i32_0 = arith.constant 0 : i32
    %c0_i32_1 = arith.constant 0 : i32
    return %c0_i32, %c0_i32_0 : i32, i32
  }
  func.func @transform_4(%arg0: i32) -> (i32, i32) {
    %c0_i32 = arith.constant 0 : i32
    %c0_i32_0 = arith.constant 0 : i32
    %c0_i32_1 = arith.constant 0 : i32
    return %c0_i32, %c0_i32_0 : i32, i32
  }
  func.func @transform_5(%arg0: i32) -> (i32, i32) {
    %c0_i32 = arith.constant 0 : i32
    %c0_i32_0 = arith.constant 0 : i32
    %c0_i32_1 = arith.constant 0 : i32
    return %c0_i32, %c0_i32_0 : i32, i32
  }
  func.func @transform_6(%arg0: i32) -> (i32, i32) {
    %c0_i32 = arith.constant 0 : i32
    %c0_i32_0 = arith.constant 0 : i32
    %c0_i32_1 = arith.constant 0 : i32
    return %c0_i32, %c0_i32_0 : i32, i32
  }
  func.func @transform_7(%arg0: i32) -> (i32, i32) {
    %c0_i32 = arith.constant 0 : i32
    %c0_i32_0 = arith.constant 0 : i32
    return %arg0, %c0_i32 : i32, i32
  }
}

</mosaic_0001>

<llo_original>
// kernel: tpu_custom_call.1
$region0: #{tpu_custom_call.1}
  #allocation0 [shape = 'u32[]', space=smem, size = 0x4, offset = 0x4, fixed_abs, tag = 'smem constant byte address 0x4 - core index']
  #allocation1 [shape = 'u32[144,128]{1,0:T(1,128)}', space=vmem, size = 0x12000, scoped, tag = 'internal scratch']
  %s0 = inlined_call_operand.hbm [shape: f32[8,128], index: 0, kind: input, shape index: {}]
  %s1 = inlined_call_operand.hbm [shape: bf16[128,1024], index: 1, kind: input, shape index: {}]
  %s2 = inlined_call_operand.hbm [shape: f32[1,1024], index: 2, kind: input, shape index: {}]
  %s3 = inlined_call_operand.hbm [shape: bf16[1024,128], index: 3, kind: input, shape index: {}]
  %s4 = inlined_call_operand.vmem [shape: f32[1,128], index: 4, kind: input, shape index: {}]
  %s5 = inlined_call_operand.hbm [shape: bf16[128,128], index: 5, kind: input, shape index: {}]
  %s6 = inlined_call_operand.vmem [shape: f32[1,128], index: 6, kind: input, shape index: {}]
  %s7 = inlined_call_operand.hbm [shape: f32[8,128], index: 7, kind: output, shape index: {}]
  %s8 = sld [smem:[#allocation0]]
  $region58: #{tpu_custom_call.1} parent=0
    _
  %s10 = ssub.s32 1, %s8
  %s11 = scalar_select 0, %s10, %s8
  $region1: #{tpu_custom_call.1} parent=0
    #allocation2 [shape = 'u8[4096]{0}', space=vmem, size = 0x1000, scoped, tag = 'input window, operand 0, single buffered']
    #allocation3 [shape = 's32[1]{0}', space=sflag, size = 0x4, scoped, tag = 'scoped memory for tpu_custom_call.1']
    #allocation4 [shape = 's32[1]{0}', space=sflag, size = 0x4, scoped, tag = 'scoped memory for tpu_custom_call.1']
    #allocation5 [shape = 'u8[262144]{0}', space=vmem, size = 0x40000, scoped, tag = 'input window, operand 1, single buffered']
    #allocation6 [shape = 's32[1]{0}', space=sflag, size = 0x4, scoped, tag = 'scoped memory for tpu_custom_call.1']
    #allocation7 [shape = 'u8[4096]{0}', space=vmem, size = 0x1000, scoped, tag = 'input window, operand 2, single buffered']
    #allocation8 [shape = 'u8[262144]{0}', space=vmem, size = 0x40000, scoped, tag = 'input window, operand 3, single buffered']
    #allocation9 [shape = 's32[1]{0}', space=sflag, size = 0x4, scoped, tag = 'scoped memory for tpu_custom_call.1']
    #allocation10 [shape = 'u8[32768]{0}', space=vmem, size = 0x8000, scoped, tag = 'input window, operand 5, single buffered']
    #allocation11 [shape = 'u8[4096]{0}', space=vmem, size = 0x1000, scoped, tag = 'output window, operand 0, single buffered']
    %12 = vsyncpa [#allocation3], 0
    %13 = vsyncpa [#allocation6], 0
    %14 = vsyncpa [#allocation9], 0
    %15 = vsyncpa [#allocation4], 0
    // Predicated region
    $region2: #{tpu_custom_call.1} parent=1 // pred_check
      _
    $region3: #{tpu_custom_call.1} parent=1 // pred_check_branch
      %17 = sbr.rel (0) target = $region5
    $region4: #{tpu_custom_call.1} parent=1 // pred_region
      %s19 = ssub.s32 128, 128
      %20 = vsyncadd [#allocation3], %s19
      %s22 = sshll.u32 [#allocation2], 4
      %s23 = int_to_ptr.vmem [resolvable:$true] %s22
      %25 = dma.hbm_to_vmem [thread:$0]  %s0, 128, %s23, [#allocation3]
    $region5: #{tpu_custom_call.1} parent=1 // pred_fallthru
      _
    // Predicated region
    $region6: #{tpu_custom_call.1} parent=1 // pred_check
      _
    $region7: #{tpu_custom_call.1} parent=1 // pred_check_branch
      %27 = sbr.rel (0) target = $region9
    $region8: #{tpu_custom_call.1} parent=1 // pred_region
      %s29 = ssub.s32 8192, 8192
      %30 = vsyncadd [#allocation6], %s29
      %s31 = sshll.u32 [#allocation5], 4
      %s32 = int_to_ptr.vmem [resolvable:$true] %s31
      %37 = dma.hbm_to_vmem [thread:$0]  %s1, 8192, %s32, [#allocation6], 512, 512, 32
    $region9: #{tpu_custom_call.1} parent=1 // pred_fallthru
      _
    // Predicated region
    $region10: #{tpu_custom_call.1} parent=1 // pred_check
      _
    $region11: #{tpu_custom_call.1} parent=1 // pred_check_branch
      %39 = sbr.rel (0) target = $region13
    $region12: #{tpu_custom_call.1} parent=1 // pred_region
      %s41 = ssub.s32 128, 128
      %42 = vsyncadd [#allocation6], %s41
      %s44 = sshll.u32 [#allocation7], 4
      %s45 = int_to_ptr.vmem [resolvable:$true] %s44
      %47 = dma.hbm_to_vmem [thread:$0]  %s2, 128, %s45, [#allocation6]
    $region13: #{tpu_custom_call.1} parent=1 // pred_fallthru
      _
    // Predicated region
    $region14: #{tpu_custom_call.1} parent=1 // pred_check
      _
    $region15: #{tpu_custom_call.1} parent=1 // pred_check_branch
      %49 = sbr.rel (0) target = $region17
    $region16: #{tpu_custom_call.1} parent=1 // pred_region
      %s51 = ssub.s32 8192, 8192
      %52 = vsyncadd [#allocation9], %s51
      %s53 = sshll.u32 [#allocation8], 4
      %s54 = int_to_ptr.vmem [resolvable:$true] %s53
      %59 = dma.hbm_to_vmem [thread:$0]  %s3, 8192, %s54, [#allocation9], 64, 64, 4
    $region17: #{tpu_custom_call.1} parent=1 // pred_fallthru
      _
    // Predicated region
    $region18: #{tpu_custom_call.1} parent=1 // pred_check
      _
    $region19: #{tpu_custom_call.1} parent=1 // pred_check_branch
      %61 = sbr.rel (0) target = $region21
    $region20: #{tpu_custom_call.1} parent=1 // pred_region
      _
    $region21: #{tpu_custom_call.1} parent=1 // pred_fallthru
      _
    // Predicated region
    $region22: #{tpu_custom_call.1} parent=1 // pred_check
      _
    $region23: #{tpu_custom_call.1} parent=1 // pred_check_branch
      %63 = sbr.rel (0) target = $region25
    $region24: #{tpu_custom_call.1} parent=1 // pred_region
      %s65 = ssub.s32 1024, 1024
      %66 = vsyncadd [#allocation9], %s65
      %s67 = sshll.u32 [#allocation10], 4
      %s68 = int_to_ptr.vmem [resolvable:$true] %s67
      %73 = dma.hbm_to_vmem [thread:$0]  %s5, 1024, %s68, [#allocation9], 64, 64, 4
    $region25: #{tpu_custom_call.1} parent=1 // pred_fallthru
      _
    // Predicated region
    $region26: #{tpu_custom_call.1} parent=1 // pred_check
      _
    $region27: #{tpu_custom_call.1} parent=1 // pred_check_branch
      %75 = sbr.rel (0) target = $region29
    $region28: #{tpu_custom_call.1} parent=1 // pred_region
      _
    $region29: #{tpu_custom_call.1} parent=1 // pred_fallthru
      _
    // Predicated region
    $region30: #{tpu_custom_call.1} parent=1 // pred_check
      _
    $region31: #{tpu_custom_call.1} parent=1 // pred_check_branch
      %77 = sbr.rel (0) target = $region33
    $region32: #{tpu_custom_call.1} parent=1 // pred_region
      %78 = dma.done [#allocation3], 128
    $region33: #{tpu_custom_call.1} parent=1 // pred_fallthru
      _
    // Predicated region
    $region34: #{tpu_custom_call.1} parent=1 // pred_check
      _
    $region35: #{tpu_custom_call.1} parent=1 // pred_check_branch
      %80 = sbr.rel (0) target = $region37
    $region36: #{tpu_custom_call.1} parent=1 // pred_region
      %81 = dma.done [#allocation6], 8192
    $region37: #{tpu_custom_call.1} parent=1 // pred_fallthru
      _
    // Predicated region
    $region38: #{tpu_custom_call.1} parent=1 // pred_check
      _
    $region39: #{tpu_custom_call.1} parent=1 // pred_check_branch
      %83 = sbr.rel (0) target = $region41
    $region40: #{tpu_custom_call.1} parent=1 // pred_region
      %84 = dma.done [#allocation6], 128
    $region41: #{tpu_custom_call.1} parent=1 // pred_fallthru
      _
    // Predicated region
    $region42: #{tpu_custom_call.1} parent=1 // pred_check
      _
    $region43: #{tpu_custom_call.1} parent=1 // pred_check_branch
      %86 = sbr.rel (0) target = $region45
    $region44: #{tpu_custom_call.1} parent=1 // pred_region
      %87 = dma.done [#allocation9], 8192
    $region45: #{tpu_custom_call.1} parent=1 // pred_fallthru
      _
    // Predicated region
    $region46: #{tpu_custom_call.1} parent=1 // pred_check
      _
    $region47: #{tpu_custom_call.1} parent=1 // pred_check_branch
      %89 = sbr.rel (0) target = $region49
    $region48: #{tpu_custom_call.1} parent=1 // pred_region
      %90 = dma.done [#allocation9], 1024
    $region49: #{tpu_custom_call.1} parent=1 // pred_fallthru
      _
    %v92 = vld [vmem:[#allocation2] sm:$0xff]
    %v93 = vpack.c.bf16 %v92, %v92
    %v94 = vld [vmem:[#allocation5] sm:$0xff]
    %v95 = vld [vmem:[#allocation5 + $0x8] sm:$0xff]
    %v96 = vld [vmem:[#allocation5 + $0x10] sm:$0xff]
    %v97 = vld [vmem:[#allocation5 + $0x18] sm:$0xff]
    %v98 = vld [vmem:[#allocation5 + $0x20] sm:$0xff]
    %v99 = vld [vmem:[#allocation5 + $0x28] sm:$0xff]
    %v100 = vld [vmem:[#allocation5 + $0x30] sm:$0xff]
    %v101 = vld [vmem:[#allocation5 + $0x38] sm:$0xff]
    %v102 = vld [vmem:[#allocation5 + $0x40] sm:$0xff]
    %v103 = vld [vmem:[#allocation5 + $0x48] sm:$0xff]
    %v104 = vld [vmem:[#allocation5 + $0x50] sm:$0xff]
    %v105 = vld [vmem:[#allocation5 + $0x58] sm:$0xff]
    %v106 = vld [vmem:[#allocation5 + $0x60] sm:$0xff]
    %v107 = vld [vmem:[#allocation5 + $0x68] sm:$0xff]
    %v108 = vld [vmem:[#allocation5 + $0x70] sm:$0xff]
    %v109 = vld [vmem:[#allocation5 + $0x78] sm:$0xff]
    %v110 = vld [vmem:[#allocation5 + $0x80] sm:$0xff]
    %v111 = vld [vmem:[#allocation5 + $0x88] sm:$0xff]
    %v112 = vld [vmem:[#allocation5 + $0x90] sm:$0xff]
    %v113 = vld [vmem:[#allocation5 + $0x98] sm:$0xff]
    %v114 = vld [vmem:[#allocation5 + $0xa0] sm:$0xff]
    %v115 = vld [vmem:[#allocation5 + $0xa8] sm:$0xff]
    %v116 = vld [vmem:[#allocation5 + $0xb0] sm:$0xff]
    %v117 = vld [vmem:[#allocation5 + $0xb8] sm:$0xff]
    %v118 = vld [vmem:[#allocation5 + $0xc0] sm:$0xff]
    %v119 = vld [vmem:[#allocation5 + $0xc8] sm:$0xff]
    %v120 = vld [vmem:[#allocation5 + $0xd0] sm:$0xff]
    %v121 = vld [vmem:[#allocation5 + $0xd8] sm:$0xff]
    %v122 = vld [vmem:[#allocation5 + $0xe0] sm:$0xff]
    %v123 = vld [vmem:[#allocation5 + $0xe8] sm:$0xff]
    %v124 = vld [vmem:[#allocation5 + $0xf0] sm:$0xff]
    %v125 = vld [vmem:[#allocation5 + $0xf8] sm:$0xff]
    %v126 = vld [vmem:[#allocation5 + $0x100] sm:$0xff]
    %v127 = vld [vmem:[#allocation5 + $0x108] sm:$0xff]
    %v128 = vld [vmem:[#allocation5 + $0x110] sm:$0xff]
    %v129 = vld [vmem:[#allocation5 + $0x118] sm:$0xff]
    %v130 = vld [vmem:[#allocation5 + $0x120] sm:$0xff]
    %v131 = vld [vmem:[#allocation5 + $0x128] sm:$0xff]
    %v132 = vld [vmem:[#allocation5 + $0x130] sm:$0xff]
    %v133 = vld [vmem:[#allocation5 + $0x138] sm:$0xff]
    %v134 = vld [vmem:[#allocation5 + $0x140] sm:$0xff]
    %v135 = vld [vmem:[#allocation5 + $0x148] sm:$0xff]
    %v136 = vld [vmem:[#allocation5 + $0x150] sm:$0xff]
    %v137 = vld [vmem:[#allocation5 + $0x158] sm:$0xff]
    %v138 = vld [vmem:[#allocation5 + $0x160] sm:$0xff]
    %v139 = vld [vmem:[#allocation5 + $0x168] sm:$0xff]
    %v140 = vld [vmem:[#allocation5 + $0x170] sm:$0xff]
    %v141 = vld [vmem:[#allocation5 + $0x178] sm:$0xff]
    %v142 = vld [vmem:[#allocation5 + $0x180] sm:$0xff]
    %v143 = vld [vmem:[#allocation5 + $0x188] sm:$0xff]
    %v144 = vld [vmem:[#allocation5 + $0x190] sm:$0xff]
    %v145 = vld [vmem:[#allocation5 + $0x198] sm:$0xff]
    %v146 = vld [vmem:[#allocation5 + $0x1a0] sm:$0xff]
    %v147 = vld [vmem:[#allocation5 + $0x1a8] sm:$0xff]
    %v148 = vld [vmem:[#allocation5 + $0x1b0] sm:$0xff]
    %v149 = vld [vmem:[#allocation5 + $0x1b8] sm:$0xff]
    %v150 = vld [vmem:[#allocation5 + $0x1c0] sm:$0xff]
    %v151 = vld [vmem:[#allocation5 + $0x1c8] sm:$0xff]
    %v152 = vld [vmem:[#allocation5 + $0x1d0] sm:$0xff]
    %v153 = vld [vmem:[#allocation5 + $0x1d8] sm:$0xff]
    %v154 = vld [vmem:[#allocation5 + $0x1e0] sm:$0xff]
    %v155 = vld [vmem:[#allocation5 + $0x1e8] sm:$0xff]
    %v156 = vld [vmem:[#allocation5 + $0x1f0] sm:$0xff]
    %v157 = vld [vmem:[#allocation5 + $0x1f8] sm:$0xff]
    %v158 = vld [vmem:[#allocation7] sm:$0xff]
    %v160 = vlaneseq
    %v161 = vshrl.u32 %v160, 7
    %v162 = vsub.s32 0, %v161
    %v163 = vrot.slane %v158, %v162
    %v164 = vlaneseq
    %v165 = vshrl.u32 %v164, 7
    %v166 = vsub.s32 1, %v165
    %v167 = vrot.slane %v158, %v166
    %v168 = vlaneseq
    %v169 = vshrl.u32 %v168, 7
    %v170 = vsub.s32 2, %v169
    %v171 = vrot.slane %v158, %v170
    %v172 = vlaneseq
    %v173 = vshrl.u32 %v172, 7
    %v174 = vsub.s32 3, %v173
    %v175 = vrot.slane %v158, %v174
    %v176 = vlaneseq
    %v177 = vshrl.u32 %v176, 7
    %v178 = vsub.s32 4, %v177
    %v179 = vrot.slane %v158, %v178
    %v180 = vlaneseq
    %v181 = vshrl.u32 %v180, 7
    %v182 = vsub.s32 5, %v181
    %v183 = vrot.slane %v158, %v182
    %v184 = vlaneseq
    %v185 = vshrl.u32 %v184, 7
    %v186 = vsub.s32 6, %v185
    %v187 = vrot.slane %v158, %v186
    %v188 = vlaneseq
    %v189 = vshrl.u32 %v188, 7
    %v190 = vsub.s32 7, %v189
    %v191 = vrot.slane %v158, %v190
    %v264 = vunpack.c.l.b16 %v94
    %v265 = vunpack.c.h.b16 %v94
    %v266 = vunpack.c.l.b16 %v95
    %v267 = vunpack.c.h.b16 %v95
    %v268 = vunpack.c.l.b16 %v96
    %v269 = vunpack.c.h.b16 %v96
    %v270 = vunpack.c.l.b16 %v97
    %v271 = vunpack.c.h.b16 %v97
    %v272 = vunpack.c.l.b16 %v98
    %v273 = vunpack.c.h.b16 %v98
    %v274 = vunpack.c.l.b16 %v99
    %v275 = vunpack.c.h.b16 %v99
    %v276 = vunpack.c.l.b16 %v100
    %v277 = vunpack.c.h.b16 %v100
    %v278 = vunpack.c.l.b16 %v101
    %v279 = vunpack.c.h.b16 %v101
    %v280 = vunpack.c.l.b16 %v102
    %v281 = vunpack.c.h.b16 %v102
    %v282 = vunpack.c.l.b16 %v103
    %v283 = vunpack.c.h.b16 %v103
    %v284 = vunpack.c.l.b16 %v104
    %v285 = vunpack.c.h.b16 %v104
    %v286 = vunpack.c.l.b16 %v105
    %v287 = vunpack.c.h.b16 %v105
    %v288 = vunpack.c.l.b16 %v106
    %v289 = vunpack.c.h.b16 %v106
    %v290 = vunpack.c.l.b16 %v107
    %v291 = vunpack.c.h.b16 %v107
    %v292 = vunpack.c.l.b16 %v108
    %v293 = vunpack.c.h.b16 %v108
    %v294 = vunpack.c.l.b16 %v109
    %v295 = vunpack.c.h.b16 %v109
    %v296 = vunpack.c.l.b16 %v110
    %v297 = vunpack.c.h.b16 %v110
    %v298 = vunpack.c.l.b16 %v111
    %v299 = vunpack.c.h.b16 %v111
    %v300 = vunpack.c.l.b16 %v112
    %v301 = vunpack.c.h.b16 %v112
    %v302 = vunpack.c.l.b16 %v113
    %v303 = vunpack.c.h.b16 %v113
    %v304 = vunpack.c.l.b16 %v114
    %v305 = vunpack.c.h.b16 %v114
    %v306 = vunpack.c.l.b16 %v115
    %v307 = vunpack.c.h.b16 %v115
    %v308 = vunpack.c.l.b16 %v116
    %v309 = vunpack.c.h.b16 %v116
    %v310 = vunpack.c.l.b16 %v117
    %v311 = vunpack.c.h.b16 %v117
    %v312 = vunpack.c.l.b16 %v118
    %v313 = vunpack.c.h.b16 %v118
    %v314 = vunpack.c.l.b16 %v119
    %v315 = vunpack.c.h.b16 %v119
    %v316 = vunpack.c.l.b16 %v120
    %v317 = vunpack.c.h.b16 %v120
    %v318 = vunpack.c.l.b16 %v121
    %v319 = vunpack.c.h.b16 %v121
    %v320 = vunpack.c.l.b16 %v122
    %v321 = vunpack.c.h.b16 %v122
    %v322 = vunpack.c.l.b16 %v123
    %v323 = vunpack.c.h.b16 %v123
    %v324 = vunpack.c.l.b16 %v124
    %v325 = vunpack.c.h.b16 %v124
    %v326 = vunpack.c.l.b16 %v125
    %v327 = vunpack.c.h.b16 %v125
    %v328 = vunpack.c.l.b16 %v126
    %v329 = vunpack.c.h.b16 %v126
    %v330 = vunpack.c.l.b16 %v127
    %v331 = vunpack.c.h.b16 %v127
    %v332 = vunpack.c.l.b16 %v128
    %v333 = vunpack.c.h.b16 %v128
    %v334 = vunpack.c.l.b16 %v129
    %v335 = vunpack.c.h.b16 %v129
    %v336 = vunpack.c.l.b16 %v130
    %v337 = vunpack.c.h.b16 %v130
    %v338 = vunpack.c.l.b16 %v131
    %v339 = vunpack.c.h.b16 %v131
    %v340 = vunpack.c.l.b16 %v132
    %v341 = vunpack.c.h.b16 %v132
    %v342 = vunpack.c.l.b16 %v133
    %v343 = vunpack.c.h.b16 %v133
    %v344 = vunpack.c.l.b16 %v134
    %v345 = vunpack.c.h.b16 %v134
    %v346 = vunpack.c.l.b16 %v135
    %v347 = vunpack.c.h.b16 %v135
    %v348 = vunpack.c.l.b16 %v136
    %v349 = vunpack.c.h.b16 %v136
    %v350 = vunpack.c.l.b16 %v137
    %v351 = vunpack.c.h.b16 %v137
    %v352 = vunpack.c.l.b16 %v138
    %v353 = vunpack.c.h.b16 %v138
    %v354 = vunpack.c.l.b16 %v139
    %v355 = vunpack.c.h.b16 %v139
    %v356 = vunpack.c.l.b16 %v140
    %v357 = vunpack.c.h.b16 %v140
    %v358 = vunpack.c.l.b16 %v141
    %v359 = vunpack.c.h.b16 %v141
    %v360 = vunpack.c.l.b16 %v142
    %v361 = vunpack.c.h.b16 %v142
    %v362 = vunpack.c.l.b16 %v143
    %v363 = vunpack.c.h.b16 %v143
    %v364 = vunpack.c.l.b16 %v144
    %v365 = vunpack.c.h.b16 %v144
    %v366 = vunpack.c.l.b16 %v145
    %v367 = vunpack.c.h.b16 %v145
    %v368 = vunpack.c.l.b16 %v146
    %v369 = vunpack.c.h.b16 %v146
    %v370 = vunpack.c.l.b16 %v147
    %v371 = vunpack.c.h.b16 %v147
    %v372 = vunpack.c.l.b16 %v148
    %v373 = vunpack.c.h.b16 %v148
    %v374 = vunpack.c.l.b16 %v149
    %v375 = vunpack.c.h.b16 %v149
    %v376 = vunpack.c.l.b16 %v150
    %v377 = vunpack.c.h.b16 %v150
    %v378 = vunpack.c.l.b16 %v151
    %v379 = vunpack.c.h.b16 %v151
    %v380 = vunpack.c.l.b16 %v152
    %v381 = vunpack.c.h.b16 %v152
    %v382 = vunpack.c.l.b16 %v153
    %v383 = vunpack.c.h.b16 %v153
    %v384 = vunpack.c.l.b16 %v154
    %v385 = vunpack.c.h.b16 %v154
    %v386 = vunpack.c.l.b16 %v155
    %v387 = vunpack.c.h.b16 %v155
    %v388 = vunpack.c.l.b16 %v156
    %v389 = vunpack.c.h.b16 %v156
    %v390 = vunpack.c.l.b16 %v157
    %v391 = vunpack.c.h.b16 %v157
    %v392 = vpack.c.b16 %v272, %v264
    %v393 = vpack.c.b16 %v273, %v265
    %v394 = vpack.c.b16 %v274, %v266
    %v395 = vpack.c.b16 %v275, %v267
    %v396 = vpack.c.b16 %v276, %v268
    %v397 = vpack.c.b16 %v277, %v269
    %v398 = vpack.c.b16 %v278, %v270
    %v399 = vpack.c.b16 %v279, %v271
    %v400 = vpack.c.b16 %v288, %v280
    %v401 = vpack.c.b16 %v289, %v281
    %v402 = vpack.c.b16 %v290, %v282
    %v403 = vpack.c.b16 %v291, %v283
    %v404 = vpack.c.b16 %v292, %v284
    %v405 = vpack.c.b16 %v293, %v285
    %v406 = vpack.c.b16 %v294, %v286
    %v407 = vpack.c.b16 %v295, %v287
    %v408 = vpack.c.b16 %v304, %v296
    %v409 = vpack.c.b16 %v305, %v297
    %v410 = vpack.c.b16 %v306, %v298
    %v411 = vpack.c.b16 %v307, %v299
    %v412 = vpack.c.b16 %v308, %v300
    %v413 = vpack.c.b16 %v309, %v301
    %v414 = vpack.c.b16 %v310, %v302
    %v415 = vpack.c.b16 %v311, %v303
    %v416 = vpack.c.b16 %v320, %v312
    %v417 = vpack.c.b16 %v321, %v313
    %v418 = vpack.c.b16 %v322, %v314
    %v419 = vpack.c.b16 %v323, %v315
    %v420 = vpack.c.b16 %v324, %v316
    %v421 = vpack.c.b16 %v325, %v317
    %v422 = vpack.c.b16 %v326, %v318
    %v423 = vpack.c.b16 %v327, %v319
    %v424 = vpack.c.b16 %v336, %v328
    %v425 = vpack.c.b16 %v337, %v329
    %v426 = vpack.c.b16 %v338, %v330
    %v427 = vpack.c.b16 %v339, %v331
    %v428 = vpack.c.b16 %v340, %v332
    %v429 = vpack.c.b16 %v341, %v333
    %v430 = vpack.c.b16 %v342, %v334
    %v431 = vpack.c.b16 %v343, %v335
    %v432 = vpack.c.b16 %v352, %v344
    %v433 = vpack.c.b16 %v353, %v345
    %v434 = vpack.c.b16 %v354, %v346
    %v435 = vpack.c.b16 %v355, %v347
    %v436 = vpack.c.b16 %v356, %v348
    %v437 = vpack.c.b16 %v357, %v349
    %v438 = vpack.c.b16 %v358, %v350
    %v439 = vpack.c.b16 %v359, %v351
    %v440 = vpack.c.b16 %v368, %v360
    %v441 = vpack.c.b16 %v369, %v361
    %v442 = vpack.c.b16 %v370, %v362
    %v443 = vpack.c.b16 %v371, %v363
    %v444 = vpack.c.b16 %v372, %v364
    %v445 = vpack.c.b16 %v373, %v365
    %v446 = vpack.c.b16 %v374, %v366
    %v447 = vpack.c.b16 %v375, %v367
    %v448 = vpack.c.b16 %v384, %v376
    %v449 = vpack.c.b16 %v385, %v377
    %v450 = vpack.c.b16 %v386, %v378
    %v451 = vpack.c.b16 %v387, %v379
    %v452 = vpack.c.b16 %v388, %v380
    %v453 = vpack.c.b16 %v389, %v381
    %v454 = vpack.c.b16 %v390, %v382
    %v455 = vpack.c.b16 %v391, %v383
    %520 = vmatprep.subr.bf16.mxu0 %v449
    %521 = vmatpush1.bf16.msra.mxu0 %v448
    %522 = vmatprep.subr.bf16.mxu0 %v441
    %523 = vmatpush1.bf16.msra.mxu0 %v440
    %524 = vmatprep.subr.bf16.mxu0 %v433
    %525 = vmatpush1.bf16.msra.mxu0 %v432
    %526 = vmatprep.subr.bf16.mxu0 %v425
    %527 = vmatpush1.bf16.msra.mxu0 %v424
    %528 = vmatprep.subr.bf16.mxu0 %v417
    %529 = vmatpush1.bf16.msra.mxu0 %v416
    %530 = vmatprep.subr.bf16.mxu0 %v409
    %531 = vmatpush1.bf16.msra.mxu0 %v408
    %532 = vmatprep.subr.bf16.mxu0 %v401
    %533 = vmatpush1.bf16.msra.mxu0 %v400
    %534 = vmatprep.subr.bf16.mxu0 %v393
    %535 = vmatpush1.bf16.msra.mxu0 %v392
    %536 = vmatprep.subr.bf16.mxu0 0
    %537 = vmatpush2.bf16.msra.mxu0 0
    %538 = vmatprep.subr.bf16.mxu0 0
    %539 = vmatpush2.bf16.msra.mxu0 0
    %540 = vmatprep.subr.bf16.mxu0 0
    %541 = vmatpush2.bf16.msra.mxu0 0
    %542 = vmatprep.subr.bf16.mxu0 0
    %543 = vmatpush2.bf16.msra.mxu0 0
    %544 = vmatprep.subr.bf16.mxu0 0
    %545 = vmatpush2.bf16.msra.mxu0 0
    %546 = vmatprep.subr.bf16.mxu0 0
    %547 = vmatpush2.bf16.msra.mxu0 0
    %548 = vmatprep.subr.bf16.mxu0 0
    %549 = vmatpush2.bf16.msra.mxu0 0
    %550 = vmatprep.subr.bf16.mxu0 0
    %551 = vmatpush2.bf16.msra.mxu0 0
    %552 = vmatprep.mubr.bf16.mxu0 0
    %553 = vmatmul.mubr.bf16.gmra.mxu0 %v93
    %v554 = vpop.f32.mrf.mxu0
    %v555 = vadd.f32 %v163, %v554
    %v556 = vpop.f32.mrf.mxu0
    %v557 = vadd.f32 %v167, %v556
    %v558 = vpop.f32.mrf.mxu0
    %v559 = vpop.f32.mrf.mxu0
    %560 = vdwg.mxu0
    %561 = vmatprep.subr.bf16.mxu0 %v451
    %562 = vmatpush1.bf16.msra.mxu0 %v450
    %563 = vmatprep.subr.bf16.mxu0 %v443
    %564 = vmatpush1.bf16.msra.mxu0 %v442
    %565 = vmatprep.subr.bf16.mxu0 %v435
    %566 = vmatpush1.bf16.msra.mxu0 %v434
    %567 = vmatprep.subr.bf16.mxu0 %v427
    %568 = vmatpush1.bf16.msra.mxu0 %v426
    %569 = vmatprep.subr.bf16.mxu0 %v419
    %570 = vmatpush1.bf16.msra.mxu0 %v418
    %571 = vmatprep.subr.bf16.mxu0 %v411
    %572 = vmatpush1.bf16.msra.mxu0 %v410
    %573 = vmatprep.subr.bf16.mxu0 %v403
    %574 = vmatpush1.bf16.msra.mxu0 %v402
    %575 = vmatprep.subr.bf16.mxu0 %v395
    %576 = vmatpush1.bf16.msra.mxu0 %v394
    %577 = vmatprep.subr.bf16.mxu0 0
    %578 = vmatpush2.bf16.msra.mxu0 0
    %579 = vmatprep.subr.bf16.mxu0 0
    %580 = vmatpush2.bf16.msra.mxu0 0
    %581 = vmatprep.subr.bf16.mxu0 0
    %582 = vmatpush2.bf16.msra.mxu0 0
    %583 = vmatprep.subr.bf16.mxu0 0
    %584 = vmatpush2.bf16.msra.mxu0 0
    %585 = vmatprep.subr.bf16.mxu0 0
    %586 = vmatpush2.bf16.msra.mxu0 0
    %587 = vmatprep.subr.bf16.mxu0 0
    %588 = vmatpush2.bf16.msra.mxu0 0
    %589 = vmatprep.subr.bf16.mxu0 0
    %590 = vmatpush2.bf16.msra.mxu0 0
    %591 = vmatprep.subr.bf16.mxu0 0
    %592 = vmatpush2.bf16.msra.mxu0 0
    %593 = vmatprep.mubr.bf16.mxu0 0
    %594 = vmatmul.mubr.bf16.gmra.mxu0 %v93
    %v595 = vpop.f32.mrf.mxu0
    %v596 = vadd.f32 %v171, %v595
    %v597 = vpop.f32.mrf.mxu0
    %v598 = vadd.f32 %v175, %v597
    %v599 = vpop.f32.mrf.mxu0
    %v600 = vpop.f32.mrf.mxu0
    %601 = vdwg.mxu0
    %602 = vmatprep.subr.bf16.mxu0 %v453
    %603 = vmatpush1.bf16.msra.mxu0 %v452
    %604 = vmatprep.subr.bf16.mxu0 %v445
    %605 = vmatpush1.bf16.msra.mxu0 %v444
    %606 = vmatprep.subr.bf16.mxu0 %v437
    %607 = vmatpush1.bf16.msra.mxu0 %v436
    %608 = vmatprep.subr.bf16.mxu0 %v429
    %609 = vmatpush1.bf16.msra.mxu0 %v428
    %610 = vmatprep.subr.bf16.mxu0 %v421
    %611 = vmatpush1.bf16.msra.mxu0 %v420
    %612 = vmatprep.subr.bf16.mxu0 %v413
    %613 = vmatpush1.bf16.msra.mxu0 %v412
    %614 = vmatprep.subr.bf16.mxu0 %v405
    %615 = vmatpush1.bf16.msra.mxu0 %v404
    %616 = vmatprep.subr.bf16.mxu0 %v397
    %617 = vmatpush1.bf16.msra.mxu0 %v396
    %618 = vmatprep.subr.bf16.mxu0 0
    %619 = vmatpush2.bf16.msra.mxu0 0
    %620 = vmatprep.subr.bf16.mxu0 0
    %621 = vmatpush2.bf16.msra.mxu0 0
    %622 = vmatprep.subr.bf16.mxu0 0
    %623 = vmatpush2.bf16.msra.mxu0 0
    %624 = vmatprep.subr.bf16.mxu0 0
    %625 = vmatpush2.bf16.msra.mxu0 0
    %626 = vmatprep.subr.bf16.mxu0 0
    %627 = vmatpush2.bf16.msra.mxu0 0
    %628 = vmatprep.subr.bf16.mxu0 0
    %629 = vmatpush2.bf16.msra.mxu0 0
    %630 = vmatprep.subr.bf16.mxu0 0
    %631 = vmatpush2.bf16.msra.mxu0 0
    %632 = vmatprep.subr.bf16.mxu0 0
    %633 = vmatpush2.bf16.msra.mxu0 0
    %634 = vmatprep.mubr.bf16.mxu0 0
    %635 = vmatmul.mubr.bf16.gmra.mxu0 %v93
    %v636 = vpop.f32.mrf.mxu0
    %v637 = vadd.f32 %v179, %v636
    %v638 = vpop.f32.mrf.mxu0
    %v639 = vadd.f32 %v183, %v638
    %v640 = vpop.f32.mrf.mxu0
    %v641 = vpop.f32.mrf.mxu0
    %642 = vdwg.mxu0
    %643 = vmatprep.subr.bf16.mxu0 %v455
    %644 = vmatpush1.bf16.msra.mxu0 %v454
    %645 = vmatprep.subr.bf16.mxu0 %v447
    %646 = vmatpush1.bf16.msra.mxu0 %v446
    %647 = vmatprep.subr.bf16.mxu0 %v439
    %648 = vmatpush1.bf16.msra.mxu0 %v438
    %649 = vmatprep.subr.bf16.mxu0 %v431
    %650 = vmatpush1.bf16.msra.mxu0 %v430
    %651 = vmatprep.subr.bf16.mxu0 %v423
    %652 = vmatpush1.bf16.msra.mxu0 %v422
    %653 = vmatprep.subr.bf16.mxu0 %v415
    %654 = vmatpush1.bf16.msra.mxu0 %v414
    %655 = vmatprep.subr.bf16.mxu0 %v407
    %656 = vmatpush1.bf16.msra.mxu0 %v406
    %657 = vmatprep.subr.bf16.mxu0 %v399
    %658 = vmatpush1.bf16.msra.mxu0 %v398
    %659 = vmatprep.subr.bf16.mxu0 0
    %660 = vmatpush2.bf16.msra.mxu0 0
    %661 = vmatprep.subr.bf16.mxu0 0
    %662 = vmatpush2.bf16.msra.mxu0 0
    %663 = vmatprep.subr.bf16.mxu0 0
    %664 = vmatpush2.bf16.msra.mxu0 0
    %665 = vmatprep.subr.bf16.mxu0 0
    %666 = vmatpush2.bf16.msra.mxu0 0
    %667 = vmatprep.subr.bf16.mxu0 0
    %668 = vmatpush2.bf16.msra.mxu0 0
    %669 = vmatprep.subr.bf16.mxu0 0
    %670 = vmatpush2.bf16.msra.mxu0 0
    %671 = vmatprep.subr.bf16.mxu0 0
    %672 = vmatpush2.bf16.msra.mxu0 0
    %673 = vmatprep.subr.bf16.mxu0 0
    %674 = vmatpush2.bf16.msra.mxu0 0
    %675 = vmatprep.mubr.bf16.mxu0 0
    %676 = vmatmul.mubr.bf16.gmra.mxu0 %v93
    %v677 = vpop.f32.mrf.mxu0
    %v678 = vadd.f32 %v187, %v677
    %v679 = vpop.f32.mrf.mxu0
    %v680 = vadd.f32 %v191, %v679
    %v681 = vpop.f32.mrf.mxu0
    %v682 = vpop.f32.mrf.mxu0
    %683 = vdwg.mxu0
    %v684 = vmax.f32 %v555, 0.0
    %v685 = vmax.f32 %v557, 0.0
    %v686 = vmax.f32 %v596, 0.0
    %v687 = vmax.f32 %v598, 0.0
    %v688 = vmax.f32 %v637, 0.0
    %v689 = vmax.f32 %v639, 0.0
    %v690 = vmax.f32 %v678, 0.0
    %v691 = vmax.f32 %v680, 0.0
    %v692 = vpack.c.bf16 %v684, %v684
    %v693 = vpack.c.bf16 %v685, %v685
    %v694 = vpack.c.bf16 %v686, %v686
    %v695 = vpack.c.bf16 %v687, %v687
    %v696 = vpack.c.bf16 %v688, %v688
    %v697 = vpack.c.bf16 %v689, %v689
    %v698 = vpack.c.bf16 %v690, %v690
    %v699 = vpack.c.bf16 %v691, %v691
    %v700 = vld [vmem:[#allocation8] sm:$0xf]
    %v701 = vld [vmem:[#allocation8 + $0x4] sm:$0xf]
    %v702 = vld [vmem:[#allocation8 + $0x8] sm:$0xf]
    %v703 = vld [vmem:[#allocation8 + $0xc] sm:$0xf]
    %v704 = vld [vmem:[#allocation8 + $0x10] sm:$0xf]
    %v705 = vld [vmem:[#allocation8 + $0x14] sm:$0xf]
    %v706 = vld [vmem:[#allocation8 + $0x18] sm:$0xf]
    %v707 = vld [vmem:[#allocation8 + $0x1c] sm:$0xf]
    %v708 = vld [vmem:[#allocation8 + $0x20] sm:$0xf]
    %v709 = vld [vmem:[#allocation8 + $0x24] sm:$0xf]
    %v710 = vld [vmem:[#allocation8 + $0x28] sm:$0xf]
    %v711 = vld [vmem:[#allocation8 + $0x2c] sm:$0xf]
    %v712 = vld [vmem:[#allocation8 + $0x30] sm:$0xf]
    %v713 = vld [vmem:[#allocation8 + $0x34] sm:$0xf]
    %v714 = vld [vmem:[#allocation8 + $0x38] sm:$0xf]
    %v715 = vld [vmem:[#allocation8 + $0x3c] sm:$0xf]
    %v716 = vld [vmem:[#allocation8 + $0x40] sm:$0xf]
    %v717 = vld [vmem:[#allocation8 + $0x44] sm:$0xf]
    %v718 = vld [vmem:[#allocation8 + $0x48] sm:$0xf]
    %v719 = vld [vmem:[#allocation8 + $0x4c] sm:$0xf]
    %v720 = vld [vmem:[#allocation8 + $0x50] sm:$0xf]
    %v721 = vld [vmem:[#allocation8 + $0x54] sm:$0xf]
    %v722 = vld [vmem:[#allocation8 + $0x58] sm:$0xf]
    %v723 = vld [vmem:[#allocation8 + $0x5c] sm:$0xf]
    %v724 = vld [vmem:[#allocation8 + $0x60] sm:$0xf]
    %v725 = vld [vmem:[#allocation8 + $0x64] sm:$0xf]
    %v726 = vld [vmem:[#allocation8 + $0x68] sm:$0xf]
    %v727 = vld [vmem:[#allocation8 + $0x6c] sm:$0xf]
    %v728 = vld [vmem:[#allocation8 + $0x70] sm:$0xf]
    %v729 = vld [vmem:[#allocation8 + $0x74] sm:$0xf]
    %v730 = vld [vmem:[#allocation8 + $0x78] sm:$0xf]
    %v731 = vld [vmem:[#allocation8 + $0x7c] sm:$0xf]
    %v732 = vld [vmem:[#allocation8 + $0x80] sm:$0xf]
    %v733 = vld [vmem:[#allocation8 + $0x84] sm:$0xf]
    %v734 = vld [vmem:[#allocation8 + $0x88] sm:$0xf]
    %v735 = vld [vmem:[#allocation8 + $0x8c] sm:$0xf]
    %v736 = vld [vmem:[#allocation8 + $0x90] sm:$0xf]
    %v737 = vld [vmem:[#allocation8 + $0x94] sm:$0xf]
    %v738 = vld [vmem:[#allocation8 + $0x98] sm:$0xf]
    %v739 = vld [vmem:[#allocation8 + $0x9c] sm:$0xf]
    %v740 = vld [vmem:[#allocation8 + $0xa0] sm:$0xf]
    %v741 = vld [vmem:[#allocation8 + $0xa4] sm:$0xf]
    %v742 = vld [vmem:[#allocation8 + $0xa8] sm:$0xf]
    %v743 = vld [vmem:[#allocation8 + $0xac] sm:$0xf]
    %v744 = vld [vmem:[#allocation8 + $0xb0] sm:$0xf]
    %v745 = vld [vmem:[#allocation8 + $0xb4] sm:$0xf]
    %v746 = vld [vmem:[#allocation8 + $0xb8] sm:$0xf]
    %v747 = vld [vmem:[#allocation8 + $0xbc] sm:$0xf]
    %v748 = vld [vmem:[#allocation8 + $0xc0] sm:$0xf]
    %v749 = vld [vmem:[#allocation8 + $0xc4] sm:$0xf]
    %v750 = vld [vmem:[#allocation8 + $0xc8] sm:$0xf]
    %v751 = vld [vmem:[#allocation8 + $0xcc] sm:$0xf]
    %v752 = vld [vmem:[#allocation8 + $0xd0] sm:$0xf]
    %v753 = vld [vmem:[#allocation8 + $0xd4] sm:$0xf]
    %v754 = vld [vmem:[#allocation8 + $0xd8] sm:$0xf]
    %v755 = vld [vmem:[#allocation8 + $0xdc] sm:$0xf]
    %v756 = vld [vmem:[#allocation8 + $0xe0] sm:$0xf]
    %v757 = vld [vmem:[#allocation8 + $0xe4] sm:$0xf]
    %v758 = vld [vmem:[#allocation8 + $0xe8] sm:$0xf]
    %v759 = vld [vmem:[#allocation8 + $0xec] sm:$0xf]
    %v760 = vld [vmem:[#allocation8 + $0xf0] sm:$0xf]
    %v761 = vld [vmem:[#allocation8 + $0xf4] sm:$0xf]
    %v762 = vld [vmem:[#allocation8 + $0xf8] sm:$0xf]
    %v763 = vld [vmem:[#allocation8 + $0xfc] sm:$0xf]
    %v764 = vld [vmem:[#allocation8 + $0x100] sm:$0xf]
    %v765 = vld [vmem:[#allocation8 + $0x104] sm:$0xf]
    %v766 = vld [vmem:[#allocation8 + $0x108] sm:$0xf]
    %v767 = vld [vmem:[#allocation8 + $0x10c] sm:$0xf]
    %v768 = vld [vmem:[#allocation8 + $0x110] sm:$0xf]
    %v769 = vld [vmem:[#allocation8 + $0x114] sm:$0xf]
    %v770 = vld [vmem:[#allocation8 + $0x118] sm:$0xf]
    %v771 = vld [vmem:[#allocation8 + $0x11c] sm:$0xf]
    %v772 = vld [vmem:[#allocation8 + $0x120] sm:$0xf]
    %v773 = vld [vmem:[#allocation8 + $0x124] sm:$0xf]
    %v774 = vld [vmem:[#allocation8 + $0x128] sm:$0xf]
    %v775 = vld [vmem:[#allocation8 + $0x12c] sm:$0xf]
    %v776 = vld [vmem:[#allocation8 + $0x130] sm:$0xf]
    %v777 = vld [vmem:[#allocation8 + $0x134] sm:$0xf]
    %v778 = vld [vmem:[#allocation8 + $0x138] sm:$0xf]
    %v779 = vld [vmem:[#allocation8 + $0x13c] sm:$0xf]
    %v780 = vld [vmem:[#allocation8 + $0x140] sm:$0xf]
    %v781 = vld [vmem:[#allocation8 + $0x144] sm:$0xf]
    %v782 = vld [vmem:[#allocation8 + $0x148] sm:$0xf]
    %v783 = vld [vmem:[#allocation8 + $0x14c] sm:$0xf]
    %v784 = vld [vmem:[#allocation8 + $0x150] sm:$0xf]
    %v785 = vld [vmem:[#allocation8 + $0x154] sm:$0xf]
    %v786 = vld [vmem:[#allocation8 + $0x158] sm:$0xf]
    %v787 = vld [vmem:[#allocation8 + $0x15c] sm:$0xf]
    %v788 = vld [vmem:[#allocation8 + $0x160] sm:$0xf]
    %v789 = vld [vmem:[#allocation8 + $0x164] sm:$0xf]
    %v790 = vld [vmem:[#allocation8 + $0x168] sm:$0xf]
    %v791 = vld [vmem:[#allocation8 + $0x16c] sm:$0xf]
    %v792 = vld [vmem:[#allocation8 + $0x170] sm:$0xf]
    %v793 = vld [vmem:[#allocation8 + $0x174] sm:$0xf]
    %v794 = vld [vmem:[#allocation8 + $0x178] sm:$0xf]
    %v795 = vld [vmem:[#allocation8 + $0x17c] sm:$0xf]
    %v796 = vld [vmem:[#allocation8 + $0x180] sm:$0xf]
    %v797 = vld [vmem:[#allocation8 + $0x184] sm:$0xf]
    %v798 = vld [vmem:[#allocation8 + $0x188] sm:$0xf]
    %v799 = vld [vmem:[#allocation8 + $0x18c] sm:$0xf]
    %v800 = vld [vmem:[#allocation8 + $0x190] sm:$0xf]
    %v801 = vld [vmem:[#allocation8 + $0x194] sm:$0xf]
    %v802 = vld [vmem:[#allocation8 + $0x198] sm:$0xf]
    %v803 = vld [vmem:[#allocation8 + $0x19c] sm:$0xf]
    %v804 = vld [vmem:[#allocation8 + $0x1a0] sm:$0xf]
    %v805 = vld [vmem:[#allocation8 + $0x1a4] sm:$0xf]
    %v806 = vld [vmem:[#allocation8 + $0x1a8] sm:$0xf]
    %v807 = vld [vmem:[#allocation8 + $0x1ac] sm:$0xf]
    %v808 = vld [vmem:[#allocation8 + $0x1b0] sm:$0xf]
    %v809 = vld [vmem:[#allocation8 + $0x1b4] sm:$0xf]
    %v810 = vld [vmem:[#allocation8 + $0x1b8] sm:$0xf]
    %v811 = vld [vmem:[#allocation8 + $0x1bc] sm:$0xf]
    %v812 = vld [vmem:[#allocation8 + $0x1c0] sm:$0xf]
    %v813 = vld [vmem:[#allocation8 + $0x1c4] sm:$0xf]
    %v814 = vld [vmem:[#allocation8 + $0x1c8] sm:$0xf]
    %v815 = vld [vmem:[#allocation8 + $0x1cc] sm:$0xf]
    %v816 = vld [vmem:[#allocation8 + $0x1d0] sm:$0xf]
    %v817 = vld [vmem:[#allocation8 + $0x1d4] sm:$0xf]
    %v818 = vld [vmem:[#allocation8 + $0x1d8] sm:$0xf]
    %v819 = vld [vmem:[#allocation8 + $0x1dc] sm:$0xf]
    %v820 = vld [vmem:[#allocation8 + $0x1e0] sm:$0xf]
    %v821 = vld [vmem:[#allocation8 + $0x1e4] sm:$0xf]
    %v822 = vld [vmem:[#allocation8 + $0x1e8] sm:$0xf]
    %v823 = vld [vmem:[#allocation8 + $0x1ec] sm:$0xf]
    %v824 = vld [vmem:[#allocation8 + $0x1f0] sm:$0xf]
    %v825 = vld [vmem:[#allocation8 + $0x1f4] sm:$0xf]
    %v826 = vld [vmem:[#allocation8 + $0x1f8] sm:$0xf]
    %v827 = vld [vmem:[#allocation8 + $0x1fc] sm:$0xf]
    %v828 = vld [vmem:[%s4] sm:$0x1]
    %v830 = vlaneseq
    %v831 = vshrl.u32 %v830, 7
    %v832 = vsub.s32 0, %v831
    %v833 = vrot.slane %v828, %v832
    %v963 = vunpack.c.l.b16 %v700
    %v964 = vunpack.c.l.b16 %v701
    %v965 = vunpack.c.l.b16 %v702
    %v966 = vunpack.c.l.b16 %v703
    %v967 = vunpack.c.l.b16 %v704
    %v968 = vunpack.c.l.b16 %v705
    %v969 = vunpack.c.l.b16 %v706
    %v970 = vunpack.c.l.b16 %v707
    %v971 = vunpack.c.l.b16 %v708
    %v972 = vunpack.c.l.b16 %v709
    %v973 = vunpack.c.l.b16 %v710
    %v974 = vunpack.c.l.b16 %v711
    %v975 = vunpack.c.l.b16 %v712
    %v976 = vunpack.c.l.b16 %v713
    %v977 = vunpack.c.l.b16 %v714
    %v978 = vunpack.c.l.b16 %v715
    %v979 = vunpack.c.l.b16 %v716
    %v980 = vunpack.c.l.b16 %v717
    %v981 = vunpack.c.l.b16 %v718
    %v982 = vunpack.c.l.b16 %v719
    %v983 = vunpack.c.l.b16 %v720
    %v984 = vunpack.c.l.b16 %v721
    %v985 = vunpack.c.l.b16 %v722
    %v986 = vunpack.c.l.b16 %v723
    %v987 = vunpack.c.l.b16 %v724
    %v988 = vunpack.c.l.b16 %v725
    %v989 = vunpack.c.l.b16 %v726
    %v990 = vunpack.c.l.b16 %v727
    %v991 = vunpack.c.l.b16 %v728
    %v992 = vunpack.c.l.b16 %v729
    %v993 = vunpack.c.l.b16 %v730
    %v994 = vunpack.c.l.b16 %v731
    %v995 = vunpack.c.l.b16 %v732
    %v996 = vunpack.c.l.b16 %v733
    %v997 = vunpack.c.l.b16 %v734
    %v998 = vunpack.c.l.b16 %v735
    %v999 = vunpack.c.l.b16 %v736
    %v1000 = vunpack.c.l.b16 %v737
    %v1001 = vunpack.c.l.b16 %v738
    %v1002 = vunpack.c.l.b16 %v739
    %v1003 = vunpack.c.l.b16 %v740
    %v1004 = vunpack.c.l.b16 %v741
    %v1005 = vunpack.c.l.b16 %v742
    %v1006 = vunpack.c.l.b16 %v743
    %v1007 = vunpack.c.l.b16 %v744
    %v1008 = vunpack.c.l.b16 %v745
    %v1009 = vunpack.c.l.b16 %v746
    %v1010 = vunpack.c.l.b16 %v747
    %v1011 = vunpack.c.l.b16 %v748
    %v1012 = vunpack.c.l.b16 %v749
    %v1013 = vunpack.c.l.b16 %v750
    %v1014 = vunpack.c.l.b16 %v751
    %v1015 = vunpack.c.l.b16 %v752
    %v1016 = vunpack.c.l.b16 %v753
    %v1017 = vunpack.c.l.b16 %v754
    %v1018 = vunpack.c.l.b16 %v755
    %v1019 = vunpack.c.l.b16 %v756
    %v1020 = vunpack.c.l.b16 %v757
    %v1021 = vunpack.c.l.b16 %v758
    %v1022 = vunpack.c.l.b16 %v759
    %v1023 = vunpack.c.l.b16 %v760
    %v1024 = vunpack.c.l.b16 %v761
    %v1025 = vunpack.c.l.b16 %v762
    %v1026 = vunpack.c.l.b16 %v763
    %v1027 = vunpack.c.l.b16 %v764
    %v1028 = vunpack.c.l.b16 %v765
    %v1029 = vunpack.c.l.b16 %v766
    %v1030 = vunpack.c.l.b16 %v767
    %v1031 = vunpack.c.l.b16 %v768
    %v1032 = vunpack.c.l.b16 %v769
    %v1033 = vunpack.c.l.b16 %v770
    %v1034 = vunpack.c.l.b16 %v771
    %v1035 = vunpack.c.l.b16 %v772
    %v1036 = vunpack.c.l.b16 %v773
    %v1037 = vunpack.c.l.b16 %v774
    %v1038 = vunpack.c.l.b16 %v775
    %v1039 = vunpack.c.l.b16 %v776
    %v1040 = vunpack.c.l.b16 %v777
    %v1041 = vunpack.c.l.b16 %v778
    %v1042 = vunpack.c.l.b16 %v779
    %v1043 = vunpack.c.l.b16 %v780
    %v1044 = vunpack.c.l.b16 %v781
    %v1045 = vunpack.c.l.b16 %v782
    %v1046 = vunpack.c.l.b16 %v783
    %v1047 = vunpack.c.l.b16 %v784
    %v1048 = vunpack.c.l.b16 %v785
    %v1049 = vunpack.c.l.b16 %v786
    %v1050 = vunpack.c.l.b16 %v787
    %v1051 = vunpack.c.l.b16 %v788
    %v1052 = vunpack.c.l.b16 %v789
    %v1053 = vunpack.c.l.b16 %v790
    %v1054 = vunpack.c.l.b16 %v791
    %v1055 = vunpack.c.l.b16 %v792
    %v1056 = vunpack.c.l.b16 %v793
    %v1057 = vunpack.c.l.b16 %v794
    %v1058 = vunpack.c.l.b16 %v795
    %v1059 = vunpack.c.l.b16 %v796
    %v1060 = vunpack.c.l.b16 %v797
    %v1061 = vunpack.c.l.b16 %v798
    %v1062 = vunpack.c.l.b16 %v799
    %v1063 = vunpack.c.l.b16 %v800
    %v1064 = vunpack.c.l.b16 %v801
    %v1065 = vunpack.c.l.b16 %v802
    %v1066 = vunpack.c.l.b16 %v803
    %v1067 = vunpack.c.l.b16 %v804
    %v1068 = vunpack.c.l.b16 %v805
    %v1069 = vunpack.c.l.b16 %v806
    %v1070 = vunpack.c.l.b16 %v807
    %v1071 = vunpack.c.l.b16 %v808
    %v1072 = vunpack.c.l.b16 %v809
    %v1073 = vunpack.c.l.b16 %v810
    %v1074 = vunpack.c.l.b16 %v811
    %v1075 = vunpack.c.l.b16 %v812
    %v1076 = vunpack.c.l.b16 %v813
    %v1077 = vunpack.c.l.b16 %v814
    %v1078 = vunpack.c.l.b16 %v815
    %v1079 = vunpack.c.l.b16 %v816
    %v1080 = vunpack.c.l.b16 %v817
    %v1081 = vunpack.c.l.b16 %v818
    %v1082 = vunpack.c.l.b16 %v819
    %v1083 = vunpack.c.l.b16 %v820
    %v1084 = vunpack.c.l.b16 %v821
    %v1085 = vunpack.c.l.b16 %v822
    %v1086 = vunpack.c.l.b16 %v823
    %v1087 = vunpack.c.l.b16 %v824
    %v1088 = vunpack.c.l.b16 %v825
    %v1089 = vunpack.c.l.b16 %v826
    %v1090 = vunpack.c.l.b16 %v827
    %v1091 = vpack.c.b16 %v964, %v963
    %v1092 = vpack.c.b16 %v966, %v965
    %v1093 = vpack.c.b16 %v968, %v967
    %v1094 = vpack.c.b16 %v970, %v969
    %v1095 = vpack.c.b16 %v972, %v971
    %v1096 = vpack.c.b16 %v974, %v973
    %v1097 = vpack.c.b16 %v976, %v975
    %v1098 = vpack.c.b16 %v978, %v977
    %v1099 = vpack.c.b16 %v980, %v979
    %v1100 = vpack.c.b16 %v982, %v981
    %v1101 = vpack.c.b16 %v984, %v983
    %v1102 = vpack.c.b16 %v986, %v985
    %v1103 = vpack.c.b16 %v988, %v987
    %v1104 = vpack.c.b16 %v990, %v989
    %v1105 = vpack.c.b16 %v992, %v991
    %v1106 = vpack.c.b16 %v994, %v993
    %v1107 = vpack.c.b16 %v996, %v995
    %v1108 = vpack.c.b16 %v998, %v997
    %v1109 = vpack.c.b16 %v1000, %v999
    %v1110 = vpack.c.b16 %v1002, %v1001
    %v1111 = vpack.c.b16 %v1004, %v1003
    %v1112 = vpack.c.b16 %v1006, %v1005
    %v1113 = vpack.c.b16 %v1008, %v1007
    %v1114 = vpack.c.b16 %v1010, %v1009
    %v1115 = vpack.c.b16 %v1012, %v1011
    %v1116 = vpack.c.b16 %v1014, %v1013
    %v1117 = vpack.c.b16 %v1016, %v1015
    %v1118 = vpack.c.b16 %v1018, %v1017
    %v1119 = vpack.c.b16 %v1020, %v1019
    %v1120 = vpack.c.b16 %v1022, %v1021
    %v1121 = vpack.c.b16 %v1024, %v1023
    %v1122 = vpack.c.b16 %v1026, %v1025
    %v1123 = vpack.c.b16 %v1028, %v1027
    %v1124 = vpack.c.b16 %v1030, %v1029
    %v1125 = vpack.c.b16 %v1032, %v1031
    %v1126 = vpack.c.b16 %v1034, %v1033
    %v1127 = vpack.c.b16 %v1036, %v1035
    %v1128 = vpack.c.b16 %v1038, %v1037
    %v1129 = vpack.c.b16 %v1040, %v1039
    %v1130 = vpack.c.b16 %v1042, %v1041
    %v1131 = vpack.c.b16 %v1044, %v1043
    %v1132 = vpack.c.b16 %v1046, %v1045
    %v1133 = vpack.c.b16 %v1048, %v1047
    %v1134 = vpack.c.b16 %v1050, %v1049
    %v1135 = vpack.c.b16 %v1052, %v1051
    %v1136 = vpack.c.b16 %v1054, %v1053
    %v1137 = vpack.c.b16 %v1056, %v1055
    %v1138 = vpack.c.b16 %v1058, %v1057
    %v1139 = vpack.c.b16 %v1060, %v1059
    %v1140 = vpack.c.b16 %v1062, %v1061
    %v1141 = vpack.c.b16 %v1064, %v1063
    %v1142 = vpack.c.b16 %v1066, %v1065
    %v1143 = vpack.c.b16 %v1068, %v1067
    %v1144 = vpack.c.b16 %v1070, %v1069
    %v1145 = vpack.c.b16 %v1072, %v1071
    %v1146 = vpack.c.b16 %v1074, %v1073
    %v1147 = vpack.c.b16 %v1076, %v1075
    %v1148 = vpack.c.b16 %v1078, %v1077
    %v1149 = vpack.c.b16 %v1080, %v1079
    %v1150 = vpack.c.b16 %v1082, %v1081
    %v1151 = vpack.c.b16 %v1084, %v1083
    %v1152 = vpack.c.b16 %v1086, %v1085
    %v1153 = vpack.c.b16 %v1088, %v1087
    %v1154 = vpack.c.b16 %v1090, %v1089
    %1219 = vmatprep.subr.bf16.mxu0 0
    %1220 = vmatpush1.bf16.msra.mxu0 %v1098
    %1221 = vmatprep.subr.bf16.mxu0 0
    %1222 = vmatpush1.bf16.msra.mxu0 %v1097
    %1223 = vmatprep.subr.bf16.mxu0 0
    %1224 = vmatpush1.bf16.msra.mxu0 %v1096
    %1225 = vmatprep.subr.bf16.mxu0 0
    %1226 = vmatpush1.bf16.msra.mxu0 %v1095
    %1227 = vmatprep.subr.bf16.mxu0 0
    %1228 = vmatpush1.bf16.msra.mxu0 %v1094
    %1229 = vmatprep.subr.bf16.mxu0 0
    %1230 = vmatpush1.bf16.msra.mxu0 %v1093
    %1231 = vmatprep.subr.bf16.mxu0 0
    %1232 = vmatpush1.bf16.msra.mxu0 %v1092
    %1233 = vmatprep.subr.bf16.mxu0 0
    %1234 = vmatpush1.bf16.msra.mxu0 %v1091
    %1235 = vmatprep.subr.bf16.mxu0 0
    %1236 = vmatpush2.bf16.msra.mxu0 %v1106
    %1237 = vmatprep.subr.bf16.mxu0 0
    %1238 = vmatpush2.bf16.msra.mxu0 %v1105
    %1239 = vmatprep.subr.bf16.mxu0 0
    %1240 = vmatpush2.bf16.msra.mxu0 %v1104
    %1241 = vmatprep.subr.bf16.mxu0 0
    %1242 = vmatpush2.bf16.msra.mxu0 %v1103
    %1243 = vmatprep.subr.bf16.mxu0 0
    %1244 = vmatpush2.bf16.msra.mxu0 %v1102
    %1245 = vmatprep.subr.bf16.mxu0 0
    %1246 = vmatpush2.bf16.msra.mxu0 %v1101
    %1247 = vmatprep.subr.bf16.mxu0 0
    %1248 = vmatpush2.bf16.msra.mxu0 %v1100
    %1249 = vmatprep.subr.bf16.mxu0 0
    %1250 = vmatpush2.bf16.msra.mxu0 %v1099
    %1251 = vmatprep.mubr.bf16.mxu0 %v693
    %1252 = vmatmul.mubr.bf16.gmra.mxu0 %v692
    %v1253 = vpop.f32.mrf.mxu0
    %v1254 = vadd.f32 %v833, %v1253
    %v1255 = vpop.f32.mrf.mxu0
    %v1256 = vpop.f32.mrf.mxu0
    %v1257 = vpop.f32.mrf.mxu0
    %1258 = vdwg.mxu0
    %1259 = vmatprep.subr.bf16.mxu0 0
    %1260 = vmatpush1.bf16.msra.mxu0 %v1114
    %1261 = vmatprep.subr.bf16.mxu0 0
    %1262 = vmatpush1.bf16.msra.mxu0 %v1113
    %1263 = vmatprep.subr.bf16.mxu0 0
    %1264 = vmatpush1.bf16.msra.mxu0 %v1112
    %1265 = vmatprep.subr.bf16.mxu0 0
    %1266 = vmatpush1.bf16.msra.mxu0 %v1111
    %1267 = vmatprep.subr.bf16.mxu0 0
    %1268 = vmatpush1.bf16.msra.mxu0 %v1110
    %1269 = vmatprep.subr.bf16.mxu0 0
    %1270 = vmatpush1.bf16.msra.mxu0 %v1109
    %1271 = vmatprep.subr.bf16.mxu0 0
    %1272 = vmatpush1.bf16.msra.mxu0 %v1108
    %1273 = vmatprep.subr.bf16.mxu0 0
    %1274 = vmatpush1.bf16.msra.mxu0 %v1107
    %1275 = vmatprep.subr.bf16.mxu0 0
    %1276 = vmatpush2.bf16.msra.mxu0 %v1122
    %1277 = vmatprep.subr.bf16.mxu0 0
    %1278 = vmatpush2.bf16.msra.mxu0 %v1121
    %1279 = vmatprep.subr.bf16.mxu0 0
    %1280 = vmatpush2.bf16.msra.mxu0 %v1120
    %1281 = vmatprep.subr.bf16.mxu0 0
    %1282 = vmatpush2.bf16.msra.mxu0 %v1119
    %1283 = vmatprep.subr.bf16.mxu0 0
    %1284 = vmatpush2.bf16.msra.mxu0 %v1118
    %1285 = vmatprep.subr.bf16.mxu0 0
    %1286 = vmatpush2.bf16.msra.mxu0 %v1117
    %1287 = vmatprep.subr.bf16.mxu0 0
    %1288 = vmatpush2.bf16.msra.mxu0 %v1116
    %1289 = vmatprep.subr.bf16.mxu0 0
    %1290 = vmatpush2.bf16.msra.mxu0 %v1115
    %1291 = vmatprep.mubr.bf16.mxu0 %v695
    %1292 = vmatmul.mubr.bf16.gmra.mxu0 %v694
    %v1293 = vpop.f32.mrf.mxu0
    %v1294 = vadd.f32 %v1254, %v1293
    %v1295 = vpop.f32.mrf.mxu0
    %v1296 = vpop.f32.mrf.mxu0
    %v1297 = vpop.f32.mrf.mxu0
    %1298 = vdwg.mxu0
    %1299 = vmatprep.subr.bf16.mxu0 0
    %1300 = vmatpush1.bf16.msra.mxu0 %v1130
    %1301 = vmatprep.subr.bf16.mxu0 0
    %1302 = vmatpush1.bf16.msra.mxu0 %v1129
    %1303 = vmatprep.subr.bf16.mxu0 0
    %1304 = vmatpush1.bf16.msra.mxu0 %v1128
    %1305 = vmatprep.subr.bf16.mxu0 0
    %1306 = vmatpush1.bf16.msra.mxu0 %v1127
    %1307 = vmatprep.subr.bf16.mxu0 0
    %1308 = vmatpush1.bf16.msra.mxu0 %v1126
    %1309 = vmatprep.subr.bf16.mxu0 0
    %1310 = vmatpush1.bf16.msra.mxu0 %v1125
    %1311 = vmatprep.subr.bf16.mxu0 0
    %1312 = vmatpush1.bf16.msra.mxu0 %v1124
    %1313 = vmatprep.subr.bf16.mxu0 0
    %1314 = vmatpush1.bf16.msra.mxu0 %v1123
    %1315 = vmatprep.subr.bf16.mxu0 0
    %1316 = vmatpush2.bf16.msra.mxu0 %v1138
    %1317 = vmatprep.subr.bf16.mxu0 0
    %1318 = vmatpush2.bf16.msra.mxu0 %v1137
    %1319 = vmatprep.subr.bf16.mxu0 0
    %1320 = vmatpush2.bf16.msra.mxu0 %v1136
    %1321 = vmatprep.subr.bf16.mxu0 0
    %1322 = vmatpush2.bf16.msra.mxu0 %v1135
    %1323 = vmatprep.subr.bf16.mxu0 0
    %1324 = vmatpush2.bf16.msra.mxu0 %v1134
    %1325 = vmatprep.subr.bf16.mxu0 0
    %1326 = vmatpush2.bf16.msra.mxu0 %v1133
    %1327 = vmatprep.subr.bf16.mxu0 0
    %1328 = vmatpush2.bf16.msra.mxu0 %v1132
    %1329 = vmatprep.subr.bf16.mxu0 0
    %1330 = vmatpush2.bf16.msra.mxu0 %v1131
    %1331 = vmatprep.mubr.bf16.mxu0 %v697
    %1332 = vmatmul.mubr.bf16.gmra.mxu0 %v696
    %v1333 = vpop.f32.mrf.mxu0
    %v1334 = vadd.f32 %v1294, %v1333
    %v1335 = vpop.f32.mrf.mxu0
    %v1336 = vpop.f32.mrf.mxu0
    %v1337 = vpop.f32.mrf.mxu0
    %1338 = vdwg.mxu0
    %1339 = vmatprep.subr.bf16.mxu0 0
    %1340 = vmatpush1.bf16.msra.mxu0 %v1146
    %1341 = vmatprep.subr.bf16.mxu0 0
    %1342 = vmatpush1.bf16.msra.mxu0 %v1145
    %1343 = vmatprep.subr.bf16.mxu0 0
    %1344 = vmatpush1.bf16.msra.mxu0 %v1144
    %1345 = vmatprep.subr.bf16.mxu0 0
    %1346 = vmatpush1.bf16.msra.mxu0 %v1143
    %1347 = vmatprep.subr.bf16.mxu0 0
    %1348 = vmatpush1.bf16.msra.mxu0 %v1142
    %1349 = vmatprep.subr.bf16.mxu0 0
    %1350 = vmatpush1.bf16.msra.mxu0 %v1141
    %1351 = vmatprep.subr.bf16.mxu0 0
    %1352 = vmatpush1.bf16.msra.mxu0 %v1140
    %1353 = vmatprep.subr.bf16.mxu0 0
    %1354 = vmatpush1.bf16.msra.mxu0 %v1139
    %1355 = vmatprep.subr.bf16.mxu0 0
    %1356 = vmatpush2.bf16.msra.mxu0 %v1154
    %1357 = vmatprep.subr.bf16.mxu0 0
    %1358 = vmatpush2.bf16.msra.mxu0 %v1153
    %1359 = vmatprep.subr.bf16.mxu0 0
    %1360 = vmatpush2.bf16.msra.mxu0 %v1152
    %1361 = vmatprep.subr.bf16.mxu0 0
    %1362 = vmatpush2.bf16.msra.mxu0 %v1151
    %1363 = vmatprep.subr.bf16.mxu0 0
    %1364 = vmatpush2.bf16.msra.mxu0 %v1150
    %1365 = vmatprep.subr.bf16.mxu0 0
    %1366 = vmatpush2.bf16.msra.mxu0 %v1149
    %1367 = vmatprep.subr.bf16.mxu0 0
    %1368 = vmatpush2.bf16.msra.mxu0 %v1148
    %1369 = vmatprep.subr.bf16.mxu0 0
    %1370 = vmatpush2.bf16.msra.mxu0 %v1147
    %1371 = vmatprep.mubr.bf16.mxu0 %v699
    %1372 = vmatmul.mubr.bf16.gmra.mxu0 %v698
    %v1373 = vpop.f32.mrf.mxu0
    %v1374 = vadd.f32 %v1334, %v1373
    %v1375 = vpop.f32.mrf.mxu0
    %v1376 = vpop.f32.mrf.mxu0
    %v1377 = vpop.f32.mrf.mxu0
    %1378 = vdwg.mxu0
    %v1379 = vmax.f32 %v1374, 0.0
    %v1380 = vpack.c.bf16 %v1379, %v1379
    %v1381 = vld [vmem:[#allocation10] sm:$0xf]
    %v1382 = vld [vmem:[#allocation10 + $0x4] sm:$0xf]
    %v1383 = vld [vmem:[#allocation10 + $0x8] sm:$0xf]
    %v1384 = vld [vmem:[#allocation10 + $0xc] sm:$0xf]
    %v1385 = vld [vmem:[#allocation10 + $0x10] sm:$0xf]
    %v1386 = vld [vmem:[#allocation10 + $0x14] sm:$0xf]
    %v1387 = vld [vmem:[#allocation10 + $0x18] sm:$0xf]
    %v1388 = vld [vmem:[#allocation10 + $0x1c] sm:$0xf]
    %v1389 = vld [vmem:[#allocation10 + $0x20] sm:$0xf]
    %v1390 = vld [vmem:[#allocation10 + $0x24] sm:$0xf]
    %v1391 = vld [vmem:[#allocation10 + $0x28] sm:$0xf]
    %v1392 = vld [vmem:[#allocation10 + $0x2c] sm:$0xf]
    %v1393 = vld [vmem:[#allocation10 + $0x30] sm:$0xf]
    %v1394 = vld [vmem:[#allocation10 + $0x34] sm:$0xf]
    %v1395 = vld [vmem:[#allocation10 + $0x38] sm:$0xf]
    %v1396 = vld [vmem:[#allocation10 + $0x3c] sm:$0xf]
    %v1397 = vld [vmem:[%s6] sm:$0x1]
    %v1399 = vlaneseq
    %v1400 = vshrl.u32 %v1399, 7
    %v1401 = vsub.s32 0, %v1400
    %v1402 = vrot.slane %v1397, %v1401
    %v1420 = vunpack.c.l.b16 %v1381
    %v1421 = vunpack.c.l.b16 %v1382
    %v1422 = vunpack.c.l.b16 %v1383
    %v1423 = vunpack.c.l.b16 %v1384
    %v1424 = vunpack.c.l.b16 %v1385
    %v1425 = vunpack.c.l.b16 %v1386
    %v1426 = vunpack.c.l.b16 %v1387
    %v1427 = vunpack.c.l.b16 %v1388
    %v1428 = vunpack.c.l.b16 %v1389
    %v1429 = vunpack.c.l.b16 %v1390
    %v1430 = vunpack.c.l.b16 %v1391
    %v1431 = vunpack.c.l.b16 %v1392
    %v1432 = vunpack.c.l.b16 %v1393
    %v1433 = vunpack.c.l.b16 %v1394
    %v1434 = vunpack.c.l.b16 %v1395
    %v1435 = vunpack.c.l.b16 %v1396
    %v1436 = vpack.c.b16 %v1421, %v1420
    %v1437 = vpack.c.b16 %v1423, %v1422
    %v1438 = vpack.c.b16 %v1425, %v1424
    %v1439 = vpack.c.b16 %v1427, %v1426
    %v1440 = vpack.c.b16 %v1429, %v1428
    %v1441 = vpack.c.b16 %v1431, %v1430
    %v1442 = vpack.c.b16 %v1433, %v1432
    %v1443 = vpack.c.b16 %v1435, %v1434
    %1452 = vmatprep.subr.bf16.mxu0 0
    %1453 = vmatpush1.bf16.msra.mxu0 %v1443
    %1454 = vmatprep.subr.bf16.mxu0 0
    %1455 = vmatpush1.bf16.msra.mxu0 %v1442
    %1456 = vmatprep.subr.bf16.mxu0 0
    %1457 = vmatpush1.bf16.msra.mxu0 %v1441
    %1458 = vmatprep.subr.bf16.mxu0 0
    %1459 = vmatpush1.bf16.msra.mxu0 %v1440
    %1460 = vmatprep.subr.bf16.mxu0 0
    %1461 = vmatpush1.bf16.msra.mxu0 %v1439
    %1462 = vmatprep.subr.bf16.mxu0 0
    %1463 = vmatpush1.bf16.msra.mxu0 %v1438
    %1464 = vmatprep.subr.bf16.mxu0 0
    %1465 = vmatpush1.bf16.msra.mxu0 %v1437
    %1466 = vmatprep.subr.bf16.mxu0 0
    %1467 = vmatpush1.bf16.msra.mxu0 %v1436
    %1468 = vmatprep.subr.bf16.mxu0 0
    %1469 = vmatpush2.bf16.msra.mxu0 0
    %1470 = vmatprep.subr.bf16.mxu0 0
    %1471 = vmatpush2.bf16.msra.mxu0 0
    %1472 = vmatprep.subr.bf16.mxu0 0
    %1473 = vmatpush2.bf16.msra.mxu0 0
    %1474 = vmatprep.subr.bf16.mxu0 0
    %1475 = vmatpush2.bf16.msra.mxu0 0
    %1476 = vmatprep.subr.bf16.mxu0 0
    %1477 = vmatpush2.bf16.msra.mxu0 0
    %1478 = vmatprep.subr.bf16.mxu0 0
    %1479 = vmatpush2.bf16.msra.mxu0 0
    %1480 = vmatprep.subr.bf16.mxu0 0
    %1481 = vmatpush2.bf16.msra.mxu0 0
    %1482 = vmatprep.subr.bf16.mxu0 0
    %1483 = vmatpush2.bf16.msra.mxu0 0
    %1484 = vmatprep.mubr.bf16.mxu0 0
    %1485 = vmatmul.mubr.bf16.gmra.mxu0 %v1380
    %v1486 = vpop.f32.mrf.mxu0
    %v1487 = vadd.f32 %v1402, %v1486
    %v1488 = vpop.f32.mrf.mxu0
    %v1489 = vpop.f32.mrf.mxu0
    %v1490 = vpop.f32.mrf.mxu0
    %1491 = vdwg.mxu0
    %1492 = vmax.xlane.f32.xlu0 %v1487
    %v1493 = vpop.xlane.xlu0 %1492
    %v1494 = vsub.f32 %v1487, %v1493
    %v1495 = vmul.f32 %v1494, 1.442695
    %v1496 = vpow.pop %v1495
    %1497 = vadd.xlane.f32.xlu0 %v1496
    %v1498 = vpop.xlane.xlu0 %1497
    %v1499 = vrcp.pop %v1498
    %v1500 = vmul.f32 %v1496, %v1499
    %1501 = vst [vmem:[#allocation11] sm:$0xff] %v1500
    // Predicated region
    $region50: #{tpu_custom_call.1} parent=1 // pred_check
      _
    $region51: #{tpu_custom_call.1} parent=1 // pred_check_branch
      %1503 = sbr.rel (0) target = $region53
    $region52: #{tpu_custom_call.1} parent=1 // pred_region
      %s1505 = ssub.s32 128, 128
      %1506 = vsyncadd [#allocation4], %s1505
      %s1508 = sshll.u32 [#allocation11], 4
      %s1509 = int_to_ptr.vmem [resolvable:$true] %s1508
      %1511 = dma.vmem_to_hbm [thread:$0]  %s1509, 128, %s7, [#allocation4]
    $region53: #{tpu_custom_call.1} parent=1 // pred_fallthru
      _
    // Predicated region
    $region54: #{tpu_custom_call.1} parent=1 // pred_check
      _
    $region55: #{tpu_custom_call.1} parent=1 // pred_check_branch
      %1513 = sbr.rel (0) target = $region57
    $region56: #{tpu_custom_call.1} parent=1 // pred_region
      %1514 = dma.done [#allocation4], 128
    $region57: #{tpu_custom_call.1} parent=1 // pred_fallthru
      _
    %1515 = vsyncpa [#allocation3], 1
    %1516 = vsyncpa [#allocation6], 1
    %1517 = vsyncpa [#allocation9], 1
    %1518 = vsyncpa [#allocation4], 1

</llo_original>
